<compile_context>
chip_gen: v5e
topology: v5e:2x2
jax: 0.10.0
libtpu: 0.0.40
codegen_flags: <defaults>
</compile_context>

<pallas_src>
import jax
import jax.numpy as jnp
from jax.experimental import pallas as pl
from jax.experimental.pallas import tpu as pltpu


def _round_up(x, m):
    return (x + m - 1) // m * m


# ----------------------------------------------------------------------------
# Kernel 1: dense feature transform  O = X @ W   (tiled over node rows)
# ----------------------------------------------------------------------------
def transform_kernel(x_ref, w_ref, o_ref):
    o_ref[...] = jnp.dot(
        x_ref[...], w_ref[...], preferred_element_type=jnp.float32
    ).astype(o_ref.dtype)


def transform(x, w, *, out_dtype=jnp.float32, tm=128):
    n, d_in = x.shape
    f_out = w.shape[1]
    assert n % tm == 0 and f_out % 128 == 0  # guaranteed by caller-side padding
    return pl.pallas_call(
        transform_kernel,
        out_shape=jax.ShapeDtypeStruct((n, f_out), out_dtype),
        grid=(n // tm,),
        in_specs=[
            pl.BlockSpec((tm, d_in), lambda i: (i, 0)),     # X row tile
            pl.BlockSpec((d_in, f_out), lambda i: (0, 0)),  # full W
        ],
        out_specs=pl.BlockSpec((tm, f_out), lambda i: (i, 0)),
        compiler_params=pltpu.CompilerParams(
            dimension_semantics=("parallel",)),
    )(x, w)


# ----------------------------------------------------------------------------
# Kernel 2: propagation + root skip + bias + ReLU
#   out[i, :] = ReLU( sum_k A_hat[i, k] @ H[k, :] + R[i, :] + bias )
# Grid: (row tiles "parallel", contraction tiles "arbitrary" last).
# ----------------------------------------------------------------------------
def arma_prop_kernel(a_ref, h_ref, r_ref, b_ref, o_ref, acc_ref):
    k = pl.program_id(1)

    @pl.when(k == 0)
    def _():
        acc_ref[...] = jnp.zeros_like(acc_ref)

    acc_ref[...] += jnp.dot(
        a_ref[...], h_ref[...], preferred_element_type=jnp.float32)

    @pl.when(k == pl.num_programs(1) - 1)
    def _():
        o_ref[...] = jnp.maximum(
            acc_ref[...] + r_ref[...] + b_ref[...], 0.0
        ).astype(o_ref.dtype)


def arma_propagate(a_hat, h, r, bias, *, tm=128, tk=None,
                   vmem_limit_bytes=64 * 1024 * 1024):
    n = a_hat.shape[0]
    f_out = h.shape[1]
    if tk is None:  # largest contraction tile dividing the padded node count
        tk = next(t for t in (1024, 512, 256, 128) if n % t == 0)
    assert n % tm == 0 and n % tk == 0

    return pl.pallas_call(
        arma_prop_kernel,
        out_shape=jax.ShapeDtypeStruct((n, f_out), jnp.float32),
        grid=(n // tm, n // tk),
        in_specs=[
            pl.BlockSpec((tm, tk), lambda i, k: (i, k)),      # A_hat tile (bf16)
            pl.BlockSpec((tk, f_out), lambda i, k: (k, 0)),   # H tile (bf16)
            pl.BlockSpec((tm, f_out), lambda i, k: (i, 0)),   # root-path tile (f32)
            pl.BlockSpec((1, f_out), lambda i, k: (0, 0)),    # bias
        ],
        out_specs=pl.BlockSpec((tm, f_out), lambda i, k: (i, 0)),
        scratch_shapes=[pltpu.VMEM((tm, f_out), jnp.float32)],
        compiler_params=pltpu.CompilerParams(
            dimension_semantics=("parallel", "arbitrary"),
            vmem_limit_bytes=vmem_limit_bytes),
    )(a_hat, h, r, bias)


# ----------------------------------------------------------------------------
# Glue: gcn_norm (add_self_loops=False) + dense, padded, bf16 A_hat.
# ----------------------------------------------------------------------------
def build_normalized_adjacency(edge_index, edge_weight, num_nodes, n_pad,
                               dtype=jnp.bfloat16):
    # TODO(synk): for large sparse graphs, replace the dense O(N^2) adjacency
    # with a blocked CSR layout + PrefetchScalarGridSpec to skip empty tiles.
    row, col = edge_index[0], edge_index[1]            # row = src, col = dst
    if edge_weight is None:
        edge_weight = jnp.ones((edge_index.shape[1],), jnp.float32)
    deg = jnp.zeros((num_nodes,), jnp.float32).at[col].add(edge_weight)
    deg_inv_sqrt = jnp.where(deg > 0, jax.lax.rsqrt(jnp.maximum(deg, 1e-38)), 0.0)
    norm = deg_inv_sqrt[row] * edge_weight * deg_inv_sqrt[col]
    a_hat = jnp.zeros((n_pad, n_pad), jnp.float32).at[col, row].add(norm)
    return a_hat.astype(dtype)


# ----------------------------------------------------------------------------
# ARMAConv module (defaults: K=1 stack, T=1 layer, ReLU, bias, no dropout).
# ----------------------------------------------------------------------------
class ARMAConvPallas:
    def __init__(self, dim_in, dim_out, key):
        self.dim_in, self.dim_out = dim_in, dim_out
        self.K, self.T = 1, 1  # num_stacks, num_layers (PyG defaults)
        k1, k2 = jax.random.split(key)

        def glorot(k, shape):
            fan_in, fan_out = shape[-2], shape[-1]
            std = (6.0 / (fan_in + fan_out)) ** 0.5
            return jax.random.uniform(k, shape, jnp.float32, -std, std)

        # Parameter shapes match PyG ARMAConv.__init__
        self.init_weight = glorot(k1, (self.K, dim_in, dim_out))          # (K, F_in, F_out)
        self.root_weight = glorot(k2, (self.T, self.K, dim_in, dim_out))  # (T, K, F_in, F_out)
        self.bias = jnp.zeros((self.T, self.K, 1, dim_out), jnp.float32)  # (T, K, 1, F_out)
        # TODO(synk): self.weight (only used when num_layers > 1) is unused for T=1.

    def __call__(self, x, edge_index, edge_weight=None):
        n, f_in = x.shape
        f_out = self.dim_out
        n_pad = _round_up(n, 128)       # row tiles of 128, no tiny-tile fallback
        f_out_pad = _round_up(f_out, 128)  # lane-dense output stores

        x_pad = jnp.zeros((n_pad, f_in), jnp.float32).at[:n].set(x)
        a_hat = build_normalized_adjacency(edge_index, edge_weight, n, n_pad,
                                           dtype=jnp.bfloat16)

        stack_outs = []
        for k in range(self.K):
            # Zero-pad weights/bias along F_out so outputs are 128-lane dense.
            w = jnp.zeros((f_in, f_out_pad), jnp.float32).at[:, :f_out].set(
                self.init_weight[k])
            w_root = jnp.zeros((f_in, f_out_pad), jnp.float32).at[:, :f_out].set(
                self.root_weight[0, k])
            b = jnp.zeros((1, f_out_pad), jnp.float32).at[:, :f_out].set(
                self.bias[0, k])

            # Hoisted transforms (computed once, not per row tile).
            h = transform(x_pad, w, out_dtype=jnp.bfloat16)   # bf16 MXU input
            r = transform(x_pad, w_root, out_dtype=jnp.float32)

            out = arma_propagate(a_hat, h, r, b)
            stack_outs.append(out[:n, :f_out])
        # mean over stacks (dim=-3 in the PyTorch code); K=1 -> identity
        return jnp.mean(jnp.stack(stack_outs, axis=0), axis=0)


# ----------------------------------------------------------------------------
# Pure-JAX fp32 reference for a correctness check.
# ----------------------------------------------------------------------------
def arma_reference(model, x, edge_index, edge_weight):
    n = x.shape[0]
    row, col = edge_index[0], edge_index[1]
    if edge_weight is None:
        edge_weight = jnp.ones((edge_index.shape[1],), jnp.float32)
    deg = jnp.zeros((n,), jnp.float32).at[col].add(edge_weight)
    deg_inv_sqrt = jnp.where(deg > 0, jax.lax.rsqrt(jnp.maximum(deg, 1e-38)), 0.0)
    norm = deg_inv_sqrt[row] * edge_weight * deg_inv_sqrt[col]
    a_hat = jnp.zeros((n, n), jnp.float32).at[col, row].add(norm)

    outs = []
    for k in range(model.K):
        h = x @ model.init_weight[k]
        out = a_hat @ h
        out = out + x @ model.root_weight[0, k] + model.bias[0, k]
        out = jnp.maximum(out, 0.0)
        outs.append(out)
    return jnp.mean(jnp.stack(outs, axis=0), axis=0)


if __name__ == "__main__":
    key = jax.random.PRNGKey(0)
    k_x, k_e, k_w, k_p = jax.random.split(key, 4)

    N, F_IN, F_OUT, E = 16, 8, 32, 48

    x = jax.random.normal(k_x, (N, F_IN), jnp.float32)
    edge_index = jax.random.randint(k_e, (2, E), 0, N, jnp.int32)
    edge_weight = jax.random.uniform(k_w, (E,), jnp.float32, 0.5, 1.5)  # batch.edge_attr

    model = ARMAConvPallas(F_IN, F_OUT, k_p)

    out = model(x, edge_index, edge_weight)
    out = jax.block_until_ready(out)

    ref = arma_reference(model, x, edge_index, edge_weight)
    assert out.shape == (N, F_OUT)
    # A_hat and H stream through the MXU in bf16 (fp32 accumulation), so allow
    # bf16-level tolerance against the fp32 reference.
    assert jnp.allclose(out, ref, atol=3e-2, rtol=3e-2)

    print("KERNEL_OK")
</pallas_src>

<mosaic_0001>
module attributes {stable_mosaic.version = 11 : i64} {
  func.func @transform_kernel(%arg0: i32, %arg1: memref<128x8xf32, #tpu.memory_space<vmem>>, %arg2: memref<8x128xf32, #tpu.memory_space<vmem>>, %arg3: memref<128x128xbf16, #tpu.memory_space<vmem>>) attributes {dimension_semantics = [#tpu.dimension_semantics<parallel>], iteration_bounds = array<i64: 1>, scalar_prefetch = 0 : i64, scratch_operands = 0 : i64, tpu.core_type = #tpu.core_type<tc>, window_params = [{transform_indices = @transform_0, window_bounds = array<i64: 128, 8>}, {pipeline_mode = #tpu.pipeline_mode<synchronous>, transform_indices = @transform_1, window_bounds = array<i64: 8, 128>}, {transform_indices = @transform_2, window_bounds = array<i64: 128, 128>}]} {
    %c0 = arith.constant 0 : index
    %c0_0 = arith.constant 0 : index
    %0 = vector.load %arg1[%c0, %c0_0] : memref<128x8xf32, #tpu.memory_space<vmem>>, vector<128x8xf32>
    %c0_1 = arith.constant 0 : index
    %c0_2 = arith.constant 0 : index
    %1 = vector.load %arg2[%c0_1, %c0_2] : memref<8x128xf32, #tpu.memory_space<vmem>>, vector<8x128xf32>
    %cst = arith.constant dense<0.000000e+00> : vector<128x128xf32>
    %2 = tpu.matmul %0, %1, %cst {dimension_numbers = #tpu.dot_dimension_numbers<[1], [0], [0], [1], [0, 0, 1, 1], [], []>} : vector<128x8xf32>, vector<8x128xf32>, vector<128x128xf32> -> vector<128x128xf32>
    %3 = arith.truncf %2 : vector<128x128xf32> to vector<128x128xbf16>
    %c0_3 = arith.constant 0 : index
    %c0_4 = arith.constant 0 : index
    %4 = vector.load %arg3[%c0_3, %c0_4] : memref<128x128xbf16, #tpu.memory_space<vmem>>, vector<128x128xbf16>
    tpu.vector_store %arg3[%c0_3, %c0_4], %3 {strides = array<i32>} : memref<128x128xbf16, #tpu.memory_space<vmem>>, vector<128x128xbf16>,
    return
  }
  func.func @transform_0(%arg0: i32) -> (i32, i32) {
    %c0_i32 = arith.constant 0 : i32
    %c0_i32_0 = arith.constant 0 : i32
    return %arg0, %c0_i32 : i32, i32
  }
  func.func @transform_1(%arg0: i32) -> (i32, i32) {
    %c0_i32 = arith.constant 0 : i32
    %c0_i32_0 = arith.constant 0 : i32
    %c0_i32_1 = arith.constant 0 : i32
    return %c0_i32, %c0_i32_0 : i32, i32
  }
  func.func @transform_2(%arg0: i32) -> (i32, i32) {
    %c0_i32 = arith.constant 0 : i32
    %c0_i32_0 = arith.constant 0 : i32
    return %arg0, %c0_i32 : i32, i32
  }
}

</mosaic_0001>

<llo_original>
// kernel: tpu_custom_call.1
$region0: #{tpu_custom_call.1}
  #allocation0 [shape = 'u32[]', space=smem, size = 0x4, offset = 0x4, fixed_abs, tag = 'smem constant byte address 0x4 - core index']
  #allocation1 [shape = 'u32[72,128]{1,0:T(1,128)}', space=vmem, size = 0x9000, scoped, tag = 'internal scratch']
  %s0 = inlined_call_operand.vmem [shape: f32[128,8], index: 0, kind: input, shape index: {}]
  %s1 = inlined_call_operand.vmem [shape: f32[8,128], index: 1, kind: input, shape index: {}]
  %s2 = inlined_call_operand.hbm [shape: bf16[128,128], index: 2, kind: output, shape index: {}]
  %s3 = sld [smem:[#allocation0]]
  $region18: #{tpu_custom_call.1} parent=0
    _
  %s5 = ssub.s32 1, %s3
  %s6 = scalar_select 0, %s5, %s3
  $region1: #{tpu_custom_call.1} parent=0
    #allocation2 [shape = 'u8[32768]{0}', space=vmem, size = 0x8000, scoped, tag = 'output window, operand 0, single buffered']
    #allocation3 [shape = 's32[1]{0}', space=sflag, size = 0x4, scoped, tag = 'scoped memory for tpu_custom_call.1']
    %7 = vsyncpa [#allocation3], 0
    // Predicated region
    $region2: #{tpu_custom_call.1} parent=1 // pred_check
      _
    $region3: #{tpu_custom_call.1} parent=1 // pred_check_branch
      %9 = sbr.rel (0) target = $region5
    $region4: #{tpu_custom_call.1} parent=1 // pred_region
      _
    $region5: #{tpu_custom_call.1} parent=1 // pred_fallthru
      _
    // Predicated region
    $region6: #{tpu_custom_call.1} parent=1 // pred_check
      _
    $region7: #{tpu_custom_call.1} parent=1 // pred_check_branch
      %11 = sbr.rel (0) target = $region9
    $region8: #{tpu_custom_call.1} parent=1 // pred_region
      _
    $region9: #{tpu_custom_call.1} parent=1 // pred_fallthru
      _
    %v12 = vld [vmem:[%s0] sm:$0xff]
    %v13 = vld [vmem:[%s0 + $0x8] sm:$0xff]
    %v14 = vld [vmem:[%s0 + $0x10] sm:$0xff]
    %v15 = vld [vmem:[%s0 + $0x18] sm:$0xff]
    %v16 = vld [vmem:[%s0 + $0x20] sm:$0xff]
    %v17 = vld [vmem:[%s0 + $0x28] sm:$0xff]
    %v18 = vld [vmem:[%s0 + $0x30] sm:$0xff]
    %v19 = vld [vmem:[%s0 + $0x38] sm:$0xff]
    %v20 = vld [vmem:[%s0 + $0x40] sm:$0xff]
    %v21 = vld [vmem:[%s0 + $0x48] sm:$0xff]
    %v22 = vld [vmem:[%s0 + $0x50] sm:$0xff]
    %v23 = vld [vmem:[%s0 + $0x58] sm:$0xff]
    %v24 = vld [vmem:[%s0 + $0x60] sm:$0xff]
    %v25 = vld [vmem:[%s0 + $0x68] sm:$0xff]
    %v26 = vld [vmem:[%s0 + $0x70] sm:$0xff]
    %v27 = vld [vmem:[%s0 + $0x78] sm:$0xff]
    %v28 = vld [vmem:[%s1] sm:$0xff]
    %vm29 = vcmask 64512
    %v31 = vsel %vm29, %v12, 0
    %v34 = vsel %vm29, %v13, 0
    %v37 = vsel %vm29, %v14, 0
    %v40 = vsel %vm29, %v15, 0
    %v43 = vsel %vm29, %v16, 0
    %v46 = vsel %vm29, %v17, 0
    %v49 = vsel %vm29, %v18, 0
    %v52 = vsel %vm29, %v19, 0
    %v55 = vsel %vm29, %v20, 0
    %v58 = vsel %vm29, %v21, 0
    %v61 = vsel %vm29, %v22, 0
    %v64 = vsel %vm29, %v23, 0
    %v67 = vsel %vm29, %v24, 0
    %v70 = vsel %vm29, %v25, 0
    %v73 = vsel %vm29, %v26, 0
    %v76 = vsel %vm29, %v27, 0
    %78 = vmatpush.msra.mxu0 0.0
    %79 = vmatpush.msra.mxu0 0.0
    %80 = vmatpush.msra.mxu0 0.0
    %81 = vmatpush.msra.mxu0 0.0
    %82 = vmatpush.msra.mxu0 0.0
    %83 = vmatpush.msra.mxu0 0.0
    %84 = vmatpush.msra.mxu0 0.0
    %85 = vmatpush.msra.mxu0 0.0
    %86 = vmatpush.msra.mxu0 0.0
    %87 = vmatpush.msra.mxu0 0.0
    %88 = vmatpush.msra.mxu0 0.0
    %89 = vmatpush.msra.mxu0 0.0
    %90 = vmatpush.msra.mxu0 0.0
    %91 = vmatpush.msra.mxu0 0.0
    %92 = vmatpush.msra.mxu0 0.0
    %93 = vmatpush.msra.mxu0 %v28
    %94 = vmatmul.f32.gmra.mxu0 %v31
    %v95 = vpop.f32.mrf.mxu0
    %v96 = vadd.f32 0.0, %v95
    %97 = vmatmul.f32.gmra.mxu0 %v34
    %v98 = vpop.f32.mrf.mxu0
    %v99 = vadd.f32 0.0, %v98
    %100 = vmatmul.f32.gmra.mxu0 %v37
    %v101 = vpop.f32.mrf.mxu0
    %v102 = vadd.f32 0.0, %v101
    %103 = vmatmul.f32.gmra.mxu0 %v40
    %v104 = vpop.f32.mrf.mxu0
    %v105 = vadd.f32 0.0, %v104
    %106 = vmatmul.f32.gmra.mxu0 %v43
    %v107 = vpop.f32.mrf.mxu0
    %v108 = vadd.f32 0.0, %v107
    %109 = vmatmul.f32.gmra.mxu0 %v46
    %v110 = vpop.f32.mrf.mxu0
    %v111 = vadd.f32 0.0, %v110
    %112 = vmatmul.f32.gmra.mxu0 %v49
    %v113 = vpop.f32.mrf.mxu0
    %v114 = vadd.f32 0.0, %v113
    %115 = vmatmul.f32.gmra.mxu0 %v52
    %v116 = vpop.f32.mrf.mxu0
    %v117 = vadd.f32 0.0, %v116
    %118 = vmatmul.f32.gmra.mxu0 %v55
    %v119 = vpop.f32.mrf.mxu0
    %v120 = vadd.f32 0.0, %v119
    %121 = vmatmul.f32.gmra.mxu0 %v58
    %v122 = vpop.f32.mrf.mxu0
    %v123 = vadd.f32 0.0, %v122
    %124 = vmatmul.f32.gmra.mxu0 %v61
    %v125 = vpop.f32.mrf.mxu0
    %v126 = vadd.f32 0.0, %v125
    %127 = vmatmul.f32.gmra.mxu0 %v64
    %v128 = vpop.f32.mrf.mxu0
    %v129 = vadd.f32 0.0, %v128
    %130 = vmatmul.f32.gmra.mxu0 %v67
    %v131 = vpop.f32.mrf.mxu0
    %v132 = vadd.f32 0.0, %v131
    %133 = vmatmul.f32.gmra.mxu0 %v70
    %v134 = vpop.f32.mrf.mxu0
    %v135 = vadd.f32 0.0, %v134
    %136 = vmatmul.f32.gmra.mxu0 %v73
    %v137 = vpop.f32.mrf.mxu0
    %v138 = vadd.f32 0.0, %v137
    %139 = vmatmul.f32.gmra.mxu0 %v76
    %v140 = vpop.f32.mrf.mxu0
    %v141 = vadd.f32 0.0, %v140
    %142 = vdwg.mxu0
    %v143 = vpack.c.bf16 %v96, %v96
    %v144 = vpack.c.bf16 %v99, %v99
    %v145 = vpack.c.bf16 %v102, %v102
    %v146 = vpack.c.bf16 %v105, %v105
    %v147 = vpack.c.bf16 %v108, %v108
    %v148 = vpack.c.bf16 %v111, %v111
    %v149 = vpack.c.bf16 %v114, %v114
    %v150 = vpack.c.bf16 %v117, %v117
    %v151 = vpack.c.bf16 %v120, %v120
    %v152 = vpack.c.bf16 %v123, %v123
    %v153 = vpack.c.bf16 %v126, %v126
    %v154 = vpack.c.bf16 %v129, %v129
    %v155 = vpack.c.bf16 %v132, %v132
    %v156 = vpack.c.bf16 %v135, %v135
    %v157 = vpack.c.bf16 %v138, %v138
    %v158 = vpack.c.bf16 %v141, %v141
    %159 = vst [vmem:[#allocation2] sm:$0xf] %v143
    %160 = vst [vmem:[#allocation2 + $0x4] sm:$0xf] %v144
    %161 = vst [vmem:[#allocation2 + $0x8] sm:$0xf] %v145
    %162 = vst [vmem:[#allocation2 + $0xc] sm:$0xf] %v146
    %163 = vst [vmem:[#allocation2 + $0x10] sm:$0xf] %v147
    %164 = vst [vmem:[#allocation2 + $0x14] sm:$0xf] %v148
    %165 = vst [vmem:[#allocation2 + $0x18] sm:$0xf] %v149
    %166 = vst [vmem:[#allocation2 + $0x1c] sm:$0xf] %v150
    %167 = vst [vmem:[#allocation2 + $0x20] sm:$0xf] %v151
    %168 = vst [vmem:[#allocation2 + $0x24] sm:$0xf] %v152
    %169 = vst [vmem:[#allocation2 + $0x28] sm:$0xf] %v153
    %170 = vst [vmem:[#allocation2 + $0x2c] sm:$0xf] %v154
    %171 = vst [vmem:[#allocation2 + $0x30] sm:$0xf] %v155
    %172 = vst [vmem:[#allocation2 + $0x34] sm:$0xf] %v156
    %173 = vst [vmem:[#allocation2 + $0x38] sm:$0xf] %v157
    %174 = vst [vmem:[#allocation2 + $0x3c] sm:$0xf] %v158
    // Predicated region
    $region10: #{tpu_custom_call.1} parent=1 // pred_check
      _
    $region11: #{tpu_custom_call.1} parent=1 // pred_check_branch
      %176 = sbr.rel (0) target = $region13
    $region12: #{tpu_custom_call.1} parent=1 // pred_region
      %178 = vsyncadd [#allocation3], 0
      %s179 = sshll.u32 [#allocation2], 4
      %s180 = int_to_ptr.vmem [resolvable:$true] %s179
      %s181 = sshll.u32 %s2, 4
      %s182 = int_to_ptr.hbm [resolvable:$true] %s181
      %187 = dma.vmem_to_hbm [thread:$0]  %s180, 1024, %s182, [#allocation3], 64, 64, 4
    $region13: #{tpu_custom_call.1} parent=1 // pred_fallthru
      _
    // Predicated region
    $region14: #{tpu_custom_call.1} parent=1 // pred_check
      _
    $region15: #{tpu_custom_call.1} parent=1 // pred_check_branch
      %189 = sbr.rel (0) target = $region17
    $region16: #{tpu_custom_call.1} parent=1 // pred_region
      %191 = dma.done [#allocation3], 1024
    $region17: #{tpu_custom_call.1} parent=1 // pred_fallthru
      _
    %192 = vsyncpa [#allocation3], 1

</llo_original>
